<compile_context>
chip_gen: v7x
topology: tpu7x:2x2x1
jax: 0.10.0
libtpu: 0.0.40
codegen_flags: <defaults>
</compile_context>

<pallas_src>
import jax
import jax.numpy as jnp
import numpy as np
from jax.experimental import pallas as pl
from jax.experimental.pallas import tpu as pltpu

INPUT_DIM = 63
H1, H2, H3 = 128, 256, 128
NUM_CLASSES = 10
HEAD_PAD = 128          # MXU-friendly classifier width; store narrows to NUM_CLASSES
BN_EPS = 1e-5


def _round_up(n, m):
    return ((n + m - 1) // m) * m


def _mlp_kernel(x_ref,
                w1_ref, b1_ref,
                w2_ref, b2_ref,
                w3_ref, b3_ref,
                w4_ref, b4_ref,
                o_ref):
    # BN (eval) is pre-folded into each Linear: body is bf16 dot -> f32 bias+ReLU.
    x = x_ref[...].astype(jnp.bfloat16)                       # (TB, 63)
    h = jnp.dot(x, w1_ref[...], preferred_element_type=jnp.float32)
    h = jnp.maximum(h + b1_ref[...], 0.0)

    h = jnp.dot(h.astype(jnp.bfloat16), w2_ref[...],
                preferred_element_type=jnp.float32)
    h = jnp.maximum(h + b2_ref[...], 0.0)

    h = jnp.dot(h.astype(jnp.bfloat16), w3_ref[...],
                preferred_element_type=jnp.float32)
    h = jnp.maximum(h + b3_ref[...], 0.0)

    o = jnp.dot(h.astype(jnp.bfloat16), w4_ref[...],          # (TB, HEAD_PAD)
                preferred_element_type=jnp.float32)
    # Narrow store: only the real classes go back to HBM.
    o_ref[...] = (o[:, :NUM_CLASSES] + b4_ref[...]).astype(o_ref.dtype)


def _choose_batch_tile(B, batch_tile):
    """Multiple-of-8 tile that minimizes pad waste and gives >=2 grid steps."""
    if B <= 8:
        return 8
    n_tiles = pl.cdiv(B, batch_tile)
    if n_tiles < 2:
        n_tiles = 2   # v7x megacore: give both TensorCores work; enables pipelining
    return min(batch_tile, _round_up(pl.cdiv(B, n_tiles), 8))


def landmark_classifier_forward(x, kparams, *, batch_tile=1024):
    """x: (B, INPUT_DIM) float. kparams: output of fold_params().

    Returns logits (B, NUM_CLASSES) float32.
    """
    B = x.shape[0]
    if B == 0:
        return jnp.zeros((0, NUM_CLASSES), jnp.float32)

    TB = _choose_batch_tile(B, batch_tile)
    B_pad = _round_up(B, TB)

    x = x.astype(jnp.float32)
    if B_pad != B:                      # pad batch only; K stays at 63 (full dim)
        x = jnp.pad(x, ((0, B_pad - B), (0, 0)))

    def const_spec(shape):
        # Full-array block, same block every grid step -> resident in VMEM.
        return pl.BlockSpec(shape, lambda i: (0, 0))

    in_specs = [
        pl.BlockSpec((TB, INPUT_DIM), lambda i: (i, 0)),   # x: tiled over batch
        const_spec((INPUT_DIM, H1)), const_spec((1, H1)),
        const_spec((H1, H2)),        const_spec((1, H2)),
        const_spec((H2, H3)),        const_spec((1, H3)),
        const_spec((H3, HEAD_PAD)),  const_spec((1, NUM_CLASSES)),
    ]

    out = pl.pallas_call(
        _mlp_kernel,
        out_shape=jax.ShapeDtypeStruct((B_pad, NUM_CLASSES), jnp.float32),
        grid=(B_pad // TB,),
        in_specs=in_specs,
        out_specs=pl.BlockSpec((TB, NUM_CLASSES), lambda i: (i, 0)),
        compiler_params=pltpu.CompilerParams(
            dimension_semantics=("parallel",)),   # shard batch tiles across TCs
    )(x,
      kparams["w1"], kparams["b1"],
      kparams["w2"], kparams["b2"],
      kparams["w3"], kparams["b3"],
      kparams["w4"], kparams["b4"])

    return out[:B] if B_pad != B else out


def make_params(key):
    """Deterministic synthetic raw parameters (PyTorch semantics, f32).

    Linear weights stored pre-transposed as (in, out); BatchNorm1d kept as
    gamma/beta/running_mean/running_var for the eval-mode fold.
    """
    ks = jax.random.split(key, 16)
    dims = [(INPUT_DIM, H1), (H1, H2), (H2, H3), (H3, NUM_CLASSES)]
    params = {}
    ki = 0
    for li, (din, dout) in enumerate(dims, start=1):
        bound = 1.0 / np.sqrt(din)
        params[f"w{li}"] = jax.random.uniform(
            ks[ki], (din, dout), jnp.float32, -bound, bound); ki += 1
        params[f"b{li}"] = jax.random.uniform(
            ks[ki], (1, dout), jnp.float32, -bound, bound); ki += 1
        if li < 4:  # BatchNorm1d follows the first three Linears
            params[f"gamma{li}"] = 1.0 + 0.1 * jax.random.normal(
                ks[ki], (1, dout), jnp.float32); ki += 1
            params[f"beta{li}"] = 0.1 * jax.random.normal(
                ks[ki], (1, dout), jnp.float32); ki += 1
            params[f"mean{li}"] = (0.05 * jnp.arange(dout, dtype=jnp.float32)
                                   .reshape(1, dout) / dout)
            params[f"var{li}"] = (1.0 + 0.01 * jnp.arange(dout, dtype=jnp.float32)
                                  .reshape(1, dout) / dout)
    return params


def fold_params(params):
    """Fold eval-mode BN into the preceding Linear; weights -> bf16, biases f32.

      scale = gamma / sqrt(var + eps)
      w' = w * scale (column-wise),  b' = b * scale + (beta - mean * scale)

    w1 is kept at K=63 (Mosaic masks the contraction pad); the head weight is
    zero-padded N 10 -> 128 so the last MXU matmul is lane-dense (the store
    narrows back to 10 in the kernel).
    """
    kp = {}
    for li in range(1, 4):
        scale = params[f"gamma{li}"] / jnp.sqrt(params[f"var{li}"] + BN_EPS)
        shift = params[f"beta{li}"] - params[f"mean{li}"] * scale
        kp[f"w{li}"] = (params[f"w{li}"] * scale).astype(jnp.bfloat16)
        kp[f"b{li}"] = (params[f"b{li}"] * scale + shift).astype(jnp.float32)
    w4 = jnp.zeros((H3, HEAD_PAD), jnp.float32).at[:, :NUM_CLASSES].set(params["w4"])
    kp["w4"] = w4.astype(jnp.bfloat16)
    kp["b4"] = params["b4"].astype(jnp.float32)          # (1, NUM_CLASSES)
    return kp


def reference_forward(x, params):
    """Pure-JAX f32 reference matching the PyTorch module in eval mode."""
    h = x
    for li in range(1, 4):
        h = h @ params[f"w{li}"] + params[f"b{li}"]
        scale = params[f"gamma{li}"] / jnp.sqrt(params[f"var{li}"] + BN_EPS)
        shift = params[f"beta{li}"] - params[f"mean{li}"] * scale
        h = jnp.maximum(h * scale + shift, 0.0)
    return h @ params["w4"] + params["b4"]


if __name__ == "__main__":
    key = jax.random.PRNGKey(0)
    k_x, k_p = jax.random.split(key)

    params = make_params(k_p)
    kparams = fold_params(params)

    # Small shape that still exercises multi-step tiling + batch padding:
    # B=19 with an 8-row tile -> B_pad=24, grid=(3,).
    B = 19
    x = jax.random.normal(k_x, (B, INPUT_DIM), jnp.float32)

    ref = reference_forward(x, params)

    out = jax.block_until_ready(
        landmark_classifier_forward(x, kparams, batch_tile=8))
    assert out.shape == (B, NUM_CLASSES)
    np.testing.assert_allclose(np.asarray(out), np.asarray(ref),
                               rtol=5e-2, atol=5e-2)   # bf16 MXU operands

    # Default tile path (auto-splits into >=2 tiles: TB=16, grid=(2,)).
    out2 = jax.block_until_ready(landmark_classifier_forward(x, kparams))
    np.testing.assert_allclose(np.asarray(out2), np.asarray(ref),
                               rtol=5e-2, atol=5e-2)

    print("KERNEL_OK")
</pallas_src>

<mosaic_0001>
module attributes {stable_mosaic.version = 11 : i64} {
  func.func @_mlp_kernel(%arg0: i32, %arg1: memref<8x63xf32, #tpu.memory_space<vmem>>, %arg2: memref<63x128xbf16, #tpu.memory_space<vmem>>, %arg3: memref<1x128xf32, #tpu.memory_space<vmem>>, %arg4: memref<128x256xbf16, #tpu.memory_space<vmem>>, %arg5: memref<1x256xf32, #tpu.memory_space<vmem>>, %arg6: memref<256x128xbf16, #tpu.memory_space<vmem>>, %arg7: memref<1x128xf32, #tpu.memory_space<vmem>>, %arg8: memref<128x128xbf16, #tpu.memory_space<vmem>>, %arg9: memref<1x10xf32, #tpu.memory_space<vmem>>, %arg10: memref<8x10xf32, #tpu.memory_space<vmem>>) attributes {dimension_semantics = [#tpu.dimension_semantics<parallel>], iteration_bounds = array<i64: 3>, scalar_prefetch = 0 : i64, scratch_operands = 0 : i64, tpu.core_type = #tpu.core_type<tc>, window_params = [{transform_indices = @transform_0, window_bounds = array<i64: 8, 63>}, {pipeline_mode = #tpu.pipeline_mode<synchronous>, transform_indices = @transform_1, window_bounds = array<i64: 63, 128>}, {pipeline_mode = #tpu.pipeline_mode<synchronous>, transform_indices = @transform_2, window_bounds = array<i64: 1, 128>}, {pipeline_mode = #tpu.pipeline_mode<synchronous>, transform_indices = @transform_3, window_bounds = array<i64: 128, 256>}, {pipeline_mode = #tpu.pipeline_mode<synchronous>, transform_indices = @transform_4, window_bounds = array<i64: 1, 256>}, {pipeline_mode = #tpu.pipeline_mode<synchronous>, transform_indices = @transform_5, window_bounds = array<i64: 256, 128>}, {pipeline_mode = #tpu.pipeline_mode<synchronous>, transform_indices = @transform_6, window_bounds = array<i64: 1, 128>}, {pipeline_mode = #tpu.pipeline_mode<synchronous>, transform_indices = @transform_7, window_bounds = array<i64: 128, 128>}, {pipeline_mode = #tpu.pipeline_mode<synchronous>, transform_indices = @transform_8, window_bounds = array<i64: 1, 10>}, {transform_indices = @transform_9, window_bounds = array<i64: 8, 10>}]} {
    %c0 = arith.constant 0 : index
    %c0_0 = arith.constant 0 : index
    %0 = vector.load %arg1[%c0, %c0_0] : memref<8x63xf32, #tpu.memory_space<vmem>>, vector<8x63xf32>
    %1 = arith.truncf %0 : vector<8x63xf32> to vector<8x63xbf16>
    %c0_1 = arith.constant 0 : index
    %c0_2 = arith.constant 0 : index
    %2 = vector.load %arg2[%c0_1, %c0_2] : memref<63x128xbf16, #tpu.memory_space<vmem>>, vector<63x128xbf16>
    %cst = arith.constant dense<0.000000e+00> : vector<8x128xf32>
    %3 = tpu.matmul %1, %2, %cst {dimension_numbers = #tpu.dot_dimension_numbers<[1], [0], [0], [1], [0, 0, 1, 1], [], []>} : vector<8x63xbf16>, vector<63x128xbf16>, vector<8x128xf32> -> vector<8x128xf32>
    %c0_3 = arith.constant 0 : index
    %c0_4 = arith.constant 0 : index
    %4 = vector.load %arg3[%c0_3, %c0_4] : memref<1x128xf32, #tpu.memory_space<vmem>>, vector<1x128xf32>
    %5 = vector.broadcast %4 : vector<1x128xf32> to vector<8x128xf32>
    %6 = arith.addf %3, %5 : vector<8x128xf32>
    %cst_5 = arith.constant 0.000000e+00 : f32
    %7 = vector.broadcast %cst_5 : f32 to vector<8x128xf32>
    %8 = arith.maximumf %6, %7 : vector<8x128xf32>
    %9 = arith.truncf %8 : vector<8x128xf32> to vector<8x128xbf16>
    %c0_6 = arith.constant 0 : index
    %c0_7 = arith.constant 0 : index
    %10 = vector.load %arg4[%c0_6, %c0_7] : memref<128x256xbf16, #tpu.memory_space<vmem>>, vector<128x256xbf16>
    %cst_8 = arith.constant dense<0.000000e+00> : vector<8x256xf32>
    %11 = tpu.matmul %9, %10, %cst_8 {dimension_numbers = #tpu.dot_dimension_numbers<[1], [0], [0], [1], [0, 0, 1, 1], [], []>} : vector<8x128xbf16>, vector<128x256xbf16>, vector<8x256xf32> -> vector<8x256xf32>
    %c0_9 = arith.constant 0 : index
    %c0_10 = arith.constant 0 : index
    %12 = vector.load %arg5[%c0_9, %c0_10] : memref<1x256xf32, #tpu.memory_space<vmem>>, vector<1x256xf32>
    %13 = vector.broadcast %12 : vector<1x256xf32> to vector<8x256xf32>
    %14 = arith.addf %11, %13 : vector<8x256xf32>
    %cst_11 = arith.constant 0.000000e+00 : f32
    %15 = vector.broadcast %cst_11 : f32 to vector<8x256xf32>
    %16 = arith.maximumf %14, %15 : vector<8x256xf32>
    %17 = arith.truncf %16 : vector<8x256xf32> to vector<8x256xbf16>
    %c0_12 = arith.constant 0 : index
    %c0_13 = arith.constant 0 : index
    %18 = vector.load %arg6[%c0_12, %c0_13] : memref<256x128xbf16, #tpu.memory_space<vmem>>, vector<256x128xbf16>
    %cst_14 = arith.constant dense<0.000000e+00> : vector<8x128xf32>
    %19 = tpu.matmul %17, %18, %cst_14 {dimension_numbers = #tpu.dot_dimension_numbers<[1], [0], [0], [1], [0, 0, 1, 1], [], []>} : vector<8x256xbf16>, vector<256x128xbf16>, vector<8x128xf32> -> vector<8x128xf32>
    %c0_15 = arith.constant 0 : index
    %c0_16 = arith.constant 0 : index
    %20 = vector.load %arg7[%c0_15, %c0_16] : memref<1x128xf32, #tpu.memory_space<vmem>>, vector<1x128xf32>
    %21 = vector.broadcast %20 : vector<1x128xf32> to vector<8x128xf32>
    %22 = arith.addf %19, %21 : vector<8x128xf32>
    %cst_17 = arith.constant 0.000000e+00 : f32
    %23 = vector.broadcast %cst_17 : f32 to vector<8x128xf32>
    %24 = arith.maximumf %22, %23 : vector<8x128xf32>
    %25 = arith.truncf %24 : vector<8x128xf32> to vector<8x128xbf16>
    %c0_18 = arith.constant 0 : index
    %c0_19 = arith.constant 0 : index
    %26 = vector.load %arg8[%c0_18, %c0_19] : memref<128x128xbf16, #tpu.memory_space<vmem>>, vector<128x128xbf16>
    %cst_20 = arith.constant dense<0.000000e+00> : vector<8x128xf32>
    %27 = tpu.matmul %25, %26, %cst_20 {dimension_numbers = #tpu.dot_dimension_numbers<[1], [0], [0], [1], [0, 0, 1, 1], [], []>} : vector<8x128xbf16>, vector<128x128xbf16>, vector<8x128xf32> -> vector<8x128xf32>
    %28 = vector.extract_strided_slice %27 {offsets = [0, 0], sizes = [8, 10], strides = [1, 1]} : vector<8x128xf32> to vector<8x10xf32>
    %c0_21 = arith.constant 0 : index
    %c0_22 = arith.constant 0 : index
    %29 = vector.load %arg9[%c0_21, %c0_22] : memref<1x10xf32, #tpu.memory_space<vmem>>, vector<1x10xf32>
    %30 = vector.broadcast %29 : vector<1x10xf32> to vector<8x10xf32>
    %31 = arith.addf %28, %30 : vector<8x10xf32>
    %c0_23 = arith.constant 0 : index
    %c0_24 = arith.constant 0 : index
    %32 = vector.load %arg10[%c0_23, %c0_24] : memref<8x10xf32, #tpu.memory_space<vmem>>, vector<8x10xf32>
    tpu.vector_store %arg10[%c0_23, %c0_24], %31 {strides = array<i32>} : memref<8x10xf32, #tpu.memory_space<vmem>>, vector<8x10xf32>,
    return
  }
  func.func @transform_0(%arg0: i32) -> (i32, i32) {
    %c0_i32 = arith.constant 0 : i32
    %c0_i32_0 = arith.constant 0 : i32
    return %arg0, %c0_i32 : i32, i32
  }
  func.func @transform_1(%arg0: i32) -> (i32, i32) {
    %c0_i32 = arith.constant 0 : i32
    %c0_i32_0 = arith.constant 0 : i32
    %c0_i32_1 = arith.constant 0 : i32
    return %c0_i32, %c0_i32_0 : i32, i32
  }
  func.func @transform_2(%arg0: i32) -> (i32, i32) {
    %c0_i32 = arith.constant 0 : i32
    %c0_i32_0 = arith.constant 0 : i32
    %c0_i32_1 = arith.constant 0 : i32
    return %c0_i32, %c0_i32_0 : i32, i32
  }
  func.func @transform_3(%arg0: i32) -> (i32, i32) {
    %c0_i32 = arith.constant 0 : i32
    %c0_i32_0 = arith.constant 0 : i32
    %c0_i32_1 = arith.constant 0 : i32
    return %c0_i32, %c0_i32_0 : i32, i32
  }
  func.func @transform_4(%arg0: i32) -> (i32, i32) {
    %c0_i32 = arith.constant 0 : i32
    %c0_i32_0 = arith.constant 0 : i32
    %c0_i32_1 = arith.constant 0 : i32
    return %c0_i32, %c0_i32_0 : i32, i32
  }
  func.func @transform_5(%arg0: i32) -> (i32, i32) {
    %c0_i32 = arith.constant 0 : i32
    %c0_i32_0 = arith.constant 0 : i32
    %c0_i32_1 = arith.constant 0 : i32
    return %c0_i32, %c0_i32_0 : i32, i32
  }
  func.func @transform_6(%arg0: i32) -> (i32, i32) {
    %c0_i32 = arith.constant 0 : i32
    %c0_i32_0 = arith.constant 0 : i32
    %c0_i32_1 = arith.constant 0 : i32
    return %c0_i32, %c0_i32_0 : i32, i32
  }
  func.func @transform_7(%arg0: i32) -> (i32, i32) {
    %c0_i32 = arith.constant 0 : i32
    %c0_i32_0 = arith.constant 0 : i32
    %c0_i32_1 = arith.constant 0 : i32
    return %c0_i32, %c0_i32_0 : i32, i32
  }
  func.func @transform_8(%arg0: i32) -> (i32, i32) {
    %c0_i32 = arith.constant 0 : i32
    %c0_i32_0 = arith.constant 0 : i32
    %c0_i32_1 = arith.constant 0 : i32
    return %c0_i32, %c0_i32_0 : i32, i32
  }
  func.func @transform_9(%arg0: i32) -> (i32, i32) {
    %c0_i32 = arith.constant 0 : i32
    %c0_i32_0 = arith.constant 0 : i32
    return %arg0, %c0_i32 : i32, i32
  }
}

</mosaic_0001>

<llo_original>
// kernel: tpu_custom_call.1
$region0: #{tpu_custom_call.1}
  #allocation0 [shape = 'u32[]', space=smem, size = 0x4, offset = 0x4, fixed_abs, tag = 'smem constant byte address 0x4 - core index']
  #allocation1 [shape = 'u32[144,128]{1,0:T(1,128)}', space=vmem, size = 0x12000, scoped, tag = 'internal scratch']
  %s0 = inlined_call_operand.hbm [shape: f32[24,63], index: 0, kind: input, shape index: {}]
  %s1 = inlined_call_operand.hbm [shape: bf16[63,128], index: 1, kind: input, shape index: {}]
  %s2 = inlined_call_operand.vmem [shape: f32[1,128], index: 2, kind: input, shape index: {}]
  %s3 = inlined_call_operand.hbm [shape: bf16[128,256], index: 3, kind: input, shape index: {}]
  %s4 = inlined_call_operand.vmem [shape: f32[1,256], index: 4, kind: input, shape index: {}]
  %s5 = inlined_call_operand.hbm [shape: bf16[256,128], index: 5, kind: input, shape index: {}]
  %s6 = inlined_call_operand.vmem [shape: f32[1,128], index: 6, kind: input, shape index: {}]
  %s7 = inlined_call_operand.hbm [shape: bf16[128,128], index: 7, kind: input, shape index: {}]
  %s8 = inlined_call_operand.vmem [shape: f32[1,10], index: 8, kind: input, shape index: {}]
  %s9 = inlined_call_operand.vmem [shape: f32[24,10], index: 9, kind: output, shape index: {}]
  %s10 = sld [smem:[#allocation0]]
  $region89: #{tpu_custom_call.1} parent=0
    _
  %s12 = ssub.s32 1, %s10
  %s13 = scalar_select 0, %s12, %s10
  $region1: #{tpu_custom_call.1} parent=0
    #allocation2 [shape = 'u8[8192]{0}', space=vmem, size = 0x2000, scoped, tag = 'input window, operand 0']
    #allocation3 [shape = 's32[2]{0}', space=sflag, size = 0x8, scoped, tag = 'scoped memory for tpu_custom_call.1']
    #allocation4 [shape = 'u8[16384]{0}', space=vmem, size = 0x4000, scoped, tag = 'input window, operand 1, single buffered']
    #allocation5 [shape = 's32[1]{0}', space=sflag, size = 0x4, scoped, tag = 'scoped memory for tpu_custom_call.1']
    #allocation6 [shape = 'u8[65536]{0}', space=vmem, size = 0x10000, scoped, tag = 'input window, operand 3, single buffered']
    #allocation7 [shape = 'u8[65536]{0}', space=vmem, size = 0x10000, scoped, tag = 'input window, operand 5, single buffered']
    #allocation8 [shape = 's32[1]{0}', space=sflag, size = 0x4, scoped, tag = 'scoped memory for tpu_custom_call.1']
    #allocation9 [shape = 'u8[32768]{0}', space=vmem, size = 0x8000, scoped, tag = 'input window, operand 7, single buffered']
    %14 = vsyncpa [#allocation3], 0
    %s15 = scalar_lea.sflag [#allocation3], 1
    %16 = vsyncpa %s15, 0
    %17 = vsyncpa [#allocation5], 0
    %18 = vsyncpa [#allocation8], 0
    loop: start=0, step=1, limit=5
    $region2: #{tpu_custom_call.1} parent=1 // loop_pre_header
      _
    $region3: #{tpu_custom_call.1} parent=1 // loop_header
      %s20 = sphi 0, %s24
      %p21 = scmp.ge.s32.totalorder %s20, 5
      %s30 = sphi 0, %s32
      %s33 = sphi 0, %s30
      %s34 = sphi 0, %s33
      %s50 = sphi 0, %s34
      %s54 = sphi 0, %s54
      %s56 = sphi 0, %s54
      %s57 = sphi 0, %s56
      %s71 = sphi 0, %s57
      %s75 = sphi 0, %s75
      %s77 = sphi 0, %s75
      %s78 = sphi 0, %s77
      %s92 = sphi 0, %s78
      %s96 = sphi 0, %s96
      %s98 = sphi 0, %s96
      %s99 = sphi 0, %s98
      %s113 = sphi 0, %s99
      %s117 = sphi 0, %s117
      %s119 = sphi 0, %s117
      %s120 = sphi 0, %s119
      %s134 = sphi 0, %s120
      %s138 = sphi 0, %s138
      %s140 = sphi 0, %s138
      %s141 = sphi 0, %s140
      %s155 = sphi 0, %s141
      %s159 = sphi 0, %s159
      %s161 = sphi 0, %s159
      %s162 = sphi 0, %s161
      %s176 = sphi 0, %s162
      %s180 = sphi 0, %s180
      %s182 = sphi 0, %s180
      %s183 = sphi 0, %s182
      %s197 = sphi 0, %s183
      %s201 = sphi 0, %s201
      %s203 = sphi 0, %s201
      %s204 = sphi 0, %s203
      %s218 = sphi 0, %s204
      %s224 = sphi 0, %s226
      %s227 = sphi 0, %s224
      %s228 = sphi 0, %s227
      %s244 = sphi 0, %s228
    $region4: #{tpu_custom_call.1} parent=1 // loop_header_branch
      %23 = sbr.rel (%p21) target = $region8
    $region5: #{tpu_custom_call.1} parent=1 // loop_body
      %s25 = ssub.s32 %s20, 1
      %s26 = ssub.s32 %s20, 2
      %s27 = sadd.s32 %s20, 1
      %s28 = ssub.s32 %s20, %s27
      %p29 = scmp.eq.s32.totalorder %s28, 0
      %s31 = sadd.s32 %s30, 1
      %s32 = scalar_select %p29, %s30, %s31
      %p35 = pneg %p29
      %p36 = scmp.eq.s32.totalorder %s20, 2
      %p37 = por %p35, %p36
      %p38 = scmp.ne.s32.totalorder %s30, %s33
      %p39 = scmp.eq.s32.totalorder %s20, 0
      %p40 = por %p38, %p39
      %p41 = scmp.ne.s32.totalorder %s30, %s33
      %p42 = scmp.eq.s32.totalorder %s25, 2
      %p43 = por %p41, %p42
      %p44 = scmp.ne.s32.totalorder %s33, %s34
      %p45 = scmp.eq.s32.totalorder %s25, 0
      %p46 = por %p44, %p45
      %p47 = scmp.ne.s32.totalorder %s33, %s34
      %p48 = scmp.eq.s32.totalorder %s26, 2
      %p49 = por %p47, %p48
      %p51 = scmp.ne.s32.totalorder %s34, %s50
      %p52 = scmp.eq.s32.totalorder %s26, 0
      %p53 = por %p51, %p52
      %s55 = sadd.s32 %s54, 1
      %p58 = scmp.eq.s32.totalorder %s20, 2
      %p59 = scmp.ne.s32.totalorder %s54, %s56
      %p60 = scmp.eq.s32.totalorder %s20, 0
      %p61 = por %p59, %p60
      %p62 = scmp.ne.s32.totalorder %s54, %s56
      %p63 = scmp.eq.s32.totalorder %s25, 2
      %p64 = por %p62, %p63
      %p65 = scmp.ne.s32.totalorder %s56, %s57
      %p66 = scmp.eq.s32.totalorder %s25, 0
      %p67 = por %p65, %p66
      %p68 = scmp.ne.s32.totalorder %s56, %s57
      %p69 = scmp.eq.s32.totalorder %s26, 2
      %p70 = por %p68, %p69
      %p72 = scmp.ne.s32.totalorder %s57, %s71
      %p73 = scmp.eq.s32.totalorder %s26, 0
      %p74 = por %p72, %p73
      %s76 = sadd.s32 %s75, 1
      %p79 = scmp.eq.s32.totalorder %s20, 2
      %p80 = scmp.ne.s32.totalorder %s75, %s77
      %p81 = scmp.eq.s32.totalorder %s20, 0
      %p82 = por %p80, %p81
      %p83 = scmp.ne.s32.totalorder %s75, %s77
      %p84 = scmp.eq.s32.totalorder %s25, 2
      %p85 = por %p83, %p84
      %p86 = scmp.ne.s32.totalorder %s77, %s78
      %p87 = scmp.eq.s32.totalorder %s25, 0
      %p88 = por %p86, %p87
      %p89 = scmp.ne.s32.totalorder %s77, %s78
      %p90 = scmp.eq.s32.totalorder %s26, 2
      %p91 = por %p89, %p90
      %p93 = scmp.ne.s32.totalorder %s78, %s92
      %p94 = scmp.eq.s32.totalorder %s26, 0
      %p95 = por %p93, %p94
      %s97 = sadd.s32 %s96, 1
      %p100 = scmp.eq.s32.totalorder %s20, 2
      %p101 = scmp.ne.s32.totalorder %s96, %s98
      %p102 = scmp.eq.s32.totalorder %s20, 0
      %p103 = por %p101, %p102
      %p104 = scmp.ne.s32.totalorder %s96, %s98
      %p105 = scmp.eq.s32.totalorder %s25, 2
      %p106 = por %p104, %p105
      %p107 = scmp.ne.s32.totalorder %s98, %s99
      %p108 = scmp.eq.s32.totalorder %s25, 0
      %p109 = por %p107, %p108
      %p110 = scmp.ne.s32.totalorder %s98, %s99
      %p111 = scmp.eq.s32.totalorder %s26, 2
      %p112 = por %p110, %p111
      %p114 = scmp.ne.s32.totalorder %s99, %s113
      %p115 = scmp.eq.s32.totalorder %s26, 0
      %p116 = por %p114, %p115
      %s118 = sadd.s32 %s117, 1
      %p121 = scmp.eq.s32.totalorder %s20, 2
      %p122 = scmp.ne.s32.totalorder %s117, %s119
      %p123 = scmp.eq.s32.totalorder %s20, 0
      %p124 = por %p122, %p123
      %p125 = scmp.ne.s32.totalorder %s117, %s119
      %p126 = scmp.eq.s32.totalorder %s25, 2
      %p127 = por %p125, %p126
      %p128 = scmp.ne.s32.totalorder %s119, %s120
      %p129 = scmp.eq.s32.totalorder %s25, 0
      %p130 = por %p128, %p129
      %p131 = scmp.ne.s32.totalorder %s119, %s120
      %p132 = scmp.eq.s32.totalorder %s26, 2
      %p133 = por %p131, %p132
      %p135 = scmp.ne.s32.totalorder %s120, %s134
      %p136 = scmp.eq.s32.totalorder %s26, 0
      %p137 = por %p135, %p136
      %s139 = sadd.s32 %s138, 1
      %p142 = scmp.eq.s32.totalorder %s20, 2
      %p143 = scmp.ne.s32.totalorder %s138, %s140
      %p144 = scmp.eq.s32.totalorder %s20, 0
      %p145 = por %p143, %p144
      %p146 = scmp.ne.s32.totalorder %s138, %s140
      %p147 = scmp.eq.s32.totalorder %s25, 2
      %p148 = por %p146, %p147
      %p149 = scmp.ne.s32.totalorder %s140, %s141
      %p150 = scmp.eq.s32.totalorder %s25, 0
      %p151 = por %p149, %p150
      %p152 = scmp.ne.s32.totalorder %s140, %s141
      %p153 = scmp.eq.s32.totalorder %s26, 2
      %p154 = por %p152, %p153
      %p156 = scmp.ne.s32.totalorder %s141, %s155
      %p157 = scmp.eq.s32.totalorder %s26, 0
      %p158 = por %p156, %p157
      %s160 = sadd.s32 %s159, 1
      %p163 = scmp.eq.s32.totalorder %s20, 2
      %p164 = scmp.ne.s32.totalorder %s159, %s161
      %p165 = scmp.eq.s32.totalorder %s20, 0
      %p166 = por %p164, %p165
      %p167 = scmp.ne.s32.totalorder %s159, %s161
      %p168 = scmp.eq.s32.totalorder %s25, 2
      %p169 = por %p167, %p168
      %p170 = scmp.ne.s32.totalorder %s161, %s162
      %p171 = scmp.eq.s32.totalorder %s25, 0
      %p172 = por %p170, %p171
      %p173 = scmp.ne.s32.totalorder %s161, %s162
      %p174 = scmp.eq.s32.totalorder %s26, 2
      %p175 = por %p173, %p174
      %p177 = scmp.ne.s32.totalorder %s162, %s176
      %p178 = scmp.eq.s32.totalorder %s26, 0
      %p179 = por %p177, %p178
      %s181 = sadd.s32 %s180, 1
      %p184 = scmp.eq.s32.totalorder %s20, 2
      %p185 = scmp.ne.s32.totalorder %s180, %s182
      %p186 = scmp.eq.s32.totalorder %s20, 0
      %p187 = por %p185, %p186
      %p188 = scmp.ne.s32.totalorder %s180, %s182
      %p189 = scmp.eq.s32.totalorder %s25, 2
      %p190 = por %p188, %p189
      %p191 = scmp.ne.s32.totalorder %s182, %s183
      %p192 = scmp.eq.s32.totalorder %s25, 0
      %p193 = por %p191, %p192
      %p194 = scmp.ne.s32.totalorder %s182, %s183
      %p195 = scmp.eq.s32.totalorder %s26, 2
      %p196 = por %p194, %p195
      %p198 = scmp.ne.s32.totalorder %s183, %s197
      %p199 = scmp.eq.s32.totalorder %s26, 0
      %p200 = por %p198, %p199
      %s202 = sadd.s32 %s201, 1
      %p205 = scmp.eq.s32.totalorder %s20, 2
      %p206 = scmp.ne.s32.totalorder %s201, %s203
      %p207 = scmp.eq.s32.totalorder %s20, 0
      %p208 = por %p206, %p207
      %p209 = scmp.ne.s32.totalorder %s201, %s203
      %p210 = scmp.eq.s32.totalorder %s25, 2
      %p211 = por %p209, %p210
      %p212 = scmp.ne.s32.totalorder %s203, %s204
      %p213 = scmp.eq.s32.totalorder %s25, 0
      %p214 = por %p212, %p213
      %p215 = scmp.ne.s32.totalorder %s203, %s204
      %p216 = scmp.eq.s32.totalorder %s26, 2
      %p217 = por %p215, %p216
      %p219 = scmp.ne.s32.totalorder %s204, %s218
      %p220 = scmp.eq.s32.totalorder %s26, 0
      %p221 = por %p219, %p220
      %s222 = ssub.s32 %s20, %s27
      %p223 = scmp.eq.s32.totalorder %s222, 0
      %s225 = sadd.s32 %s224, 1
      %s226 = scalar_select %p223, %s224, %s225
      %p229 = pneg %p223
      %p230 = scmp.eq.s32.totalorder %s20, 2
      %p231 = por %p229, %p230
      %p232 = scmp.ne.s32.totalorder %s224, %s227
      %p233 = scmp.eq.s32.totalorder %s20, 0
      %p234 = por %p232, %p233
      %p235 = scmp.ne.s32.totalorder %s224, %s227
      %p236 = scmp.eq.s32.totalorder %s25, 2
      %p237 = por %p235, %p236
      %p238 = scmp.ne.s32.totalorder %s227, %s228
      %p239 = scmp.eq.s32.totalorder %s25, 0
      %p240 = por %p238, %p239
      %p241 = scmp.ne.s32.totalorder %s227, %s228
      %p242 = scmp.eq.s32.totalorder %s26, 2
      %p243 = por %p241, %p242
      %p245 = scmp.ne.s32.totalorder %s228, %s244
      %p246 = scmp.eq.s32.totalorder %s26, 0
      %p247 = por %p245, %p246
      %p248 = scmp.le.s32.totalorder 1, %s20
      %p249 = scmp.lt.s32.totalorder %s20, 4
      %p250 = pnand %p248, %p249
      %p251 = pneg %p250
      // Predicated region
      $region9: #{tpu_custom_call.1} parent=5 // pred_check
        _
      $region10: #{tpu_custom_call.1} parent=5 // pred_check_branch
        %253 = sbr.rel (%p250) target = $region12
      $region11: #{tpu_custom_call.1} parent=5 // pred_region
        %s254 = ssub.s32 %s20, 1
        // Predicated region
        $region13: #{tpu_custom_call.1} parent=11 // pred_check
          %p255 = pneg %p67
        $region14: #{tpu_custom_call.1} parent=11 // pred_check_branch
          %257 = sbr.rel (%p255) target = $region16
        $region15: #{tpu_custom_call.1} parent=11 // pred_region
          %s259 = ssub.s32 512, 512
          %260 = vsyncadd [#allocation5], %s259
          %s261 = sshll.u32 [#allocation4], 4
          %s262 = int_to_ptr.vmem [resolvable:$true] %s261
          %267 = dma.hbm_to_vmem [thread:$0]  %s1, 512, %s262, [#allocation5], 64, 64, 4
        $region16: #{tpu_custom_call.1} parent=11 // pred_fallthru
          _
        // Predicated region
        $region17: #{tpu_custom_call.1} parent=11 // pred_check
          %p268 = pneg %p88
        $region18: #{tpu_custom_call.1} parent=11 // pred_check_branch
          %270 = sbr.rel (%p268) target = $region20
        $region19: #{tpu_custom_call.1} parent=11 // pred_region
          _
        $region20: #{tpu_custom_call.1} parent=11 // pred_fallthru
          _
        // Predicated region
        $region21: #{tpu_custom_call.1} parent=11 // pred_check
          %p271 = pneg %p109
        $region22: #{tpu_custom_call.1} parent=11 // pred_check_branch
          %273 = sbr.rel (%p271) target = $region24
        $region23: #{tpu_custom_call.1} parent=11 // pred_region
          %s275 = ssub.s32 2048, 2048
          %276 = vsyncadd [#allocation5], %s275
          %s277 = sshll.u32 [#allocation6], 4
          %s278 = int_to_ptr.vmem [resolvable:$true] %s277
          %283 = dma.hbm_to_vmem [thread:$0]  %s3, 2048, %s278, [#allocation5], 128, 128, 8
        $region24: #{tpu_custom_call.1} parent=11 // pred_fallthru
          _
        // Predicated region
        $region25: #{tpu_custom_call.1} parent=11 // pred_check
          %p284 = pneg %p130
        $region26: #{tpu_custom_call.1} parent=11 // pred_check_branch
          %286 = sbr.rel (%p284) target = $region28
        $region27: #{tpu_custom_call.1} parent=11 // pred_region
          _
        $region28: #{tpu_custom_call.1} parent=11 // pred_fallthru
          _
        // Predicated region
        $region29: #{tpu_custom_call.1} parent=11 // pred_check
          %p287 = pneg %p151
        $region30: #{tpu_custom_call.1} parent=11 // pred_check_branch
          %289 = sbr.rel (%p287) target = $region32
        $region31: #{tpu_custom_call.1} parent=11 // pred_region
          %s291 = ssub.s32 2048, 2048
          %292 = vsyncadd [#allocation8], %s291
          %s293 = sshll.u32 [#allocation7], 4
          %s294 = int_to_ptr.vmem [resolvable:$true] %s293
          %299 = dma.hbm_to_vmem [thread:$0]  %s5, 2048, %s294, [#allocation8], 64, 64, 4
        $region32: #{tpu_custom_call.1} parent=11 // pred_fallthru
          _
        // Predicated region
        $region33: #{tpu_custom_call.1} parent=11 // pred_check
          %p300 = pneg %p172
        $region34: #{tpu_custom_call.1} parent=11 // pred_check_branch
          %302 = sbr.rel (%p300) target = $region36
        $region35: #{tpu_custom_call.1} parent=11 // pred_region
          _
        $region36: #{tpu_custom_call.1} parent=11 // pred_fallthru
          _
        // Predicated region
        $region37: #{tpu_custom_call.1} parent=11 // pred_check
          %p303 = pneg %p193
        $region38: #{tpu_custom_call.1} parent=11 // pred_check_branch
          %305 = sbr.rel (%p303) target = $region40
        $region39: #{tpu_custom_call.1} parent=11 // pred_region
          %s307 = ssub.s32 1024, 1024
          %308 = vsyncadd [#allocation8], %s307
          %s309 = sshll.u32 [#allocation9], 4
          %s310 = int_to_ptr.vmem [resolvable:$true] %s309
          %315 = dma.hbm_to_vmem [thread:$0]  %s7, 1024, %s310, [#allocation8], 64, 64, 4
        $region40: #{tpu_custom_call.1} parent=11 // pred_fallthru
          _
        // Predicated region
        $region41: #{tpu_custom_call.1} parent=11 // pred_check
          %p316 = pneg %p214
        $region42: #{tpu_custom_call.1} parent=11 // pred_check_branch
          %318 = sbr.rel (%p316) target = $region44
        $region43: #{tpu_custom_call.1} parent=11 // pred_region
          _
        $region44: #{tpu_custom_call.1} parent=11 // pred_fallthru
          _
      $region12: #{tpu_custom_call.1} parent=5 // pred_fallthru
        _
      %p319 = scmp.lt.s32.totalorder %s20, 3
      // Predicated region
      $region45: #{tpu_custom_call.1} parent=5 // pred_check
        %p320 = pneg %p319
      $region46: #{tpu_custom_call.1} parent=5 // pred_check_branch
        %322 = sbr.rel (%p320) target = $region48
      $region47: #{tpu_custom_call.1} parent=5 // pred_region
        // Predicated region
        $region49: #{tpu_custom_call.1} parent=47 // pred_check
          %p323 = pneg %p40
        $region50: #{tpu_custom_call.1} parent=47 // pred_check_branch
          %325 = sbr.rel (%p323) target = $region52
        $region51: #{tpu_custom_call.1} parent=47 // pred_region
          %s326 = sand.u32 %s30, 1
          %s327 = scalar_lea.sflag [#allocation3], %s326
          %s328 = sand.u32 %s30, 1
          %s329 = smul.addr %s328, 8
          %s330 = scalar_lea.vmem [#allocation2], %s329
          %s332 = ssub.s32 128, 128
          %333 = vsyncadd %s327, %s332
          %s334 = smul.addr %s20, 128
          %s335 = scalar_lea.hbm %s0, %s334
          %s337 = sshll.u32 %s330, 4
          %s338 = int_to_ptr.vmem [resolvable:$true] %s337
          %340 = dma.hbm_to_vmem [thread:$0]  %s335, 128, %s338, %s327
        $region52: #{tpu_custom_call.1} parent=47 // pred_fallthru
          _
      $region48: #{tpu_custom_call.1} parent=5 // pred_fallthru
        _
      %p341 = scmp.le.s32.totalorder 1, %s20
      %p342 = scmp.lt.s32.totalorder %s20, 4
      %p343 = pnand %p341, %p342
      %p344 = pneg %p343
      // Predicated region
      $region53: #{tpu_custom_call.1} parent=5 // pred_check
        _
      $region54: #{tpu_custom_call.1} parent=5 // pred_check_branch
        %346 = sbr.rel (%p343) target = $region56
      $region55: #{tpu_custom_call.1} parent=5 // pred_region
        %s347 = ssub.s32 %s20, 1
        %s348 = sand.u32 %s33, 1
        %s349 = scalar_lea.sflag [#allocation3], %s348
        %s350 = sand.u32 %s33, 1
        %s351 = smul.addr %s350, 8
        %s352 = scalar_lea.vmem [#allocation2], %s351
        // Predicated region
        $region57: #{tpu_custom_call.1} parent=55 // pred_check
          %p353 = pneg %p46
        $region58: #{tpu_custom_call.1} parent=55 // pred_check_branch
          %355 = sbr.rel (%p353) target = $region60
        $region59: #{tpu_custom_call.1} parent=55 // pred_region
          %356 = dma.done %s349, 128
        $region60: #{tpu_custom_call.1} parent=55 // pred_fallthru
          _
        // Predicated region
        $region61: #{tpu_custom_call.1} parent=55 // pred_check
          %p357 = pneg %p67
        $region62: #{tpu_custom_call.1} parent=55 // pred_check_branch
          %359 = sbr.rel (%p357) target = $region64
        $region63: #{tpu_custom_call.1} parent=55 // pred_region
          %360 = dma.done [#allocation5], 512
        $region64: #{tpu_custom_call.1} parent=55 // pred_fallthru
          _
        // Predicated region
        $region65: #{tpu_custom_call.1} parent=55 // pred_check
          %p361 = pneg %p109
        $region66: #{tpu_custom_call.1} parent=55 // pred_check_branch
          %363 = sbr.rel (%p361) target = $region68
        $region67: #{tpu_custom_call.1} parent=55 // pred_region
          %364 = dma.done [#allocation5], 2048
        $region68: #{tpu_custom_call.1} parent=55 // pred_fallthru
          _
        // Predicated region
        $region69: #{tpu_custom_call.1} parent=55 // pred_check
          %p365 = pneg %p151
        $region70: #{tpu_custom_call.1} parent=55 // pred_check_branch
          %367 = sbr.rel (%p365) target = $region72
        $region71: #{tpu_custom_call.1} parent=55 // pred_region
          %368 = dma.done [#allocation8], 2048
        $region72: #{tpu_custom_call.1} parent=55 // pred_fallthru
          _
        // Predicated region
        $region73: #{tpu_custom_call.1} parent=55 // pred_check
          %p369 = pneg %p193
        $region74: #{tpu_custom_call.1} parent=55 // pred_check_branch
          %371 = sbr.rel (%p369) target = $region76
        $region75: #{tpu_custom_call.1} parent=55 // pred_region
          %372 = dma.done [#allocation8], 1024
        $region76: #{tpu_custom_call.1} parent=55 // pred_fallthru
          _
        %s373 = sand.u32 %s33, 1
        %s374 = scalar_lea.sflag [#allocation3], %s373
        %s375 = sand.u32 %s33, 1
        %s376 = smul.addr %s375, 8
        %s377 = scalar_lea.vmem [#allocation2], %s376
        %p378 = pneg %p46
        %p379 = pneg %p43
        %p380 = pneg %p67
        %p381 = pneg %p64
        %p382 = pneg %p88
        %p383 = pneg %p85
        %p384 = pneg %p109
        %p385 = pneg %p106
        %p386 = pneg %p130
        %p387 = pneg %p127
        %p388 = pneg %p151
        %p389 = pneg %p148
        %p390 = pneg %p172
        %p391 = pneg %p169
        %p392 = pneg %p193
        %p393 = pneg %p190
        %p394 = pneg %p214
        %p395 = pneg %p211
        %p396 = pneg %p240
        %p397 = pneg %p237
        %p398 = scmp.lt.s32.totalorder %s25, 2
        %s399 = scalar_select %p398, %s25, 2
        %s400 = smul.addr %s399, 8
        %s401 = scalar_lea.vmem %s9, %s400
        %p402 = scmp.lt.s32.totalorder %s25, 2
        %s403 = scalar_select %p402, %s25, 2
        %s404 = smul.addr %s403, 8
        %s405 = scalar_lea.vmem %s9, %s404
        %v407 = vld [vmem:[%s352] sm:$0xff]
        %v408 = vpack.c.bf16 %v407, %v407
        %v409 = vld [vmem:[#allocation4] sm:$0xf]
        %v410 = vld [vmem:[#allocation4 + $0x4] sm:$0xf]
        %v411 = vld [vmem:[#allocation4 + $0x8] sm:$0xf]
        %v412 = vld [vmem:[#allocation4 + $0xc] sm:$0xf]
        %v413 = vld [vmem:[#allocation4 + $0x10] sm:$0xf]
        %v414 = vld [vmem:[#allocation4 + $0x14] sm:$0xf]
        %v415 = vld [vmem:[#allocation4 + $0x18] sm:$0xf]
        %v416 = vld [vmem:[#allocation4 + $0x1c] sm:$0xf]
        %v417 = vld [vmem:[%s2] sm:$0x1]
        %v419 = vlaneseq
        %v420 = vshrl.u32 %v419, 7
        %v421 = vsub.s32 0, %v420
        %v422 = vrot.slane %v417, %v421
        %v432 = vunpack.c.l.b16 %v409
        %v433 = vunpack.c.l.b16 %v410
        %v434 = vunpack.c.l.b16 %v411
        %v435 = vunpack.c.l.b16 %v412
        %v436 = vunpack.c.l.b16 %v413
        %v437 = vunpack.c.l.b16 %v414
        %v438 = vunpack.c.l.b16 %v415
        %v439 = vunpack.c.l.b16 %v416
        %v440 = vpack.c.b16 %v433, %v432
        %v441 = vpack.c.b16 %v435, %v434
        %v442 = vpack.c.b16 %v437, %v436
        %v443 = vpack.c.b16 %v439, %v438
        %vm447 = vcmask 515072
        %v449 = vsel %vm447, %v408, 0
        %vm451 = vcmask 1046528
        %vm452 = vcmask 1047552
        %v453 = vsel %vm451, 4294967295, 65535
        %v454 = vsel %vm452, %v453, 0
        %v456 = vand.u32 %v443, %v454
        %458 = vmatprep.subr.bf16.mxu0 0
        %459 = vmatpush1.bf16.msra.mxu0 %v440
        %460 = vmatprep.subr.bf16.mxu0 0
        %461 = vmatpush1.bf16.msra.mxu0 %v441
        %462 = vmatprep.subr.bf16.mxu0 0
        %463 = vmatpush1.bf16.msra.mxu0 %v442
        %464 = vmatprep.subr.bf16.mxu0 0
        %465 = vmatpush1.bf16.msra.mxu0 %v456
        %466 = vmatprep.subr.bf16.mxu0 0
        %467 = vmatpush1.bf16.msra.mxu0 0
        %468 = vmatprep.subr.bf16.mxu0 0
        %469 = vmatpush1.bf16.msra.mxu0 0
        %470 = vmatprep.subr.bf16.mxu0 0
        %471 = vmatpush1.bf16.msra.mxu0 0
        %472 = vmatprep.subr.bf16.mxu0 0
        %473 = vmatpush1.bf16.msra.mxu0 0
        %474 = vmatprep.subr.bf16.mxu0 0
        %475 = vmatpush1.bf16.msra.mxu0 0
        %476 = vmatprep.subr.bf16.mxu0 0
        %477 = vmatpush1.bf16.msra.mxu0 0
        %478 = vmatprep.subr.bf16.mxu0 0
        %479 = vmatpush1.bf16.msra.mxu0 0
        %480 = vmatprep.subr.bf16.mxu0 0
        %481 = vmatpush1.bf16.msra.mxu0 0
        %482 = vmatprep.subr.bf16.mxu0 0
        %483 = vmatpush1.bf16.msra.mxu0 0
        %484 = vmatprep.subr.bf16.mxu0 0
        %485 = vmatpush1.bf16.msra.mxu0 0
        %486 = vmatprep.subr.bf16.mxu0 0
        %487 = vmatpush1.bf16.msra.mxu0 0
        %488 = vmatprep.subr.bf16.mxu0 0
        %489 = vmatpush1.bf16.msra.mxu0 0
        %490 = vmatprep.mubr.bf16.mxu0 0
        %491 = vmatmul.mubr.bf16.gmra.mrb[0].mxu0 %v449
        %v492 = vpop.f32.mrb[0].mxu0
        %v493 = vadd.f32 %v422, %v492
        %v494 = vpop.f32.mrb[0].mxu0
        %v495 = vpop.f32.mrb[0].mxu0
        %v496 = vpop.f32.mrb[0].mxu0
        %497 = vdwg.mxu0
        %v498 = vmax.f32 %v493, 0.0
        %v499 = vpack.c.bf16 %v498, %v498
        %v500 = vld [vmem:[#allocation6] sm:$0xff]
        %v501 = vld [vmem:[#allocation6 + $0x8] sm:$0xff]
        %v502 = vld [vmem:[#allocation6 + $0x10] sm:$0xff]
        %v503 = vld [vmem:[#allocation6 + $0x18] sm:$0xff]
        %v504 = vld [vmem:[#allocation6 + $0x20] sm:$0xff]
        %v505 = vld [vmem:[#allocation6 + $0x28] sm:$0xff]
        %v506 = vld [vmem:[#allocation6 + $0x30] sm:$0xff]
        %v507 = vld [vmem:[#allocation6 + $0x38] sm:$0xff]
        %v508 = vld [vmem:[#allocation6 + $0x40] sm:$0xff]
        %v509 = vld [vmem:[#allocation6 + $0x48] sm:$0xff]
        %v510 = vld [vmem:[#allocation6 + $0x50] sm:$0xff]
        %v511 = vld [vmem:[#allocation6 + $0x58] sm:$0xff]
        %v512 = vld [vmem:[#allocation6 + $0x60] sm:$0xff]
        %v513 = vld [vmem:[#allocation6 + $0x68] sm:$0xff]
        %v514 = vld [vmem:[#allocation6 + $0x70] sm:$0xff]
        %v515 = vld [vmem:[#allocation6 + $0x78] sm:$0xff]
        %v516 = vld [vmem:[%s4] sm:$0x3]
        %v518 = vlaneseq
        %v519 = vshrl.u32 %v518, 7
        %v520 = vsub.s32 0, %v519
        %v521 = vrot.slane %v516, %v520
        %v522 = vlaneseq
        %v523 = vshrl.u32 %v522, 7
        %v524 = vsub.s32 1, %v523
        %v525 = vrot.slane %v516, %v524
        %v544 = vunpack.c.l.b16 %v500
        %v545 = vunpack.c.h.b16 %v500
        %v546 = vunpack.c.l.b16 %v501
        %v547 = vunpack.c.h.b16 %v501
        %v548 = vunpack.c.l.b16 %v502
        %v549 = vunpack.c.h.b16 %v502
        %v550 = vunpack.c.l.b16 %v503
        %v551 = vunpack.c.h.b16 %v503
        %v552 = vunpack.c.l.b16 %v504
        %v553 = vunpack.c.h.b16 %v504
        %v554 = vunpack.c.l.b16 %v505
        %v555 = vunpack.c.h.b16 %v505
        %v556 = vunpack.c.l.b16 %v506
        %v557 = vunpack.c.h.b16 %v506
        %v558 = vunpack.c.l.b16 %v507
        %v559 = vunpack.c.h.b16 %v507
        %v560 = vunpack.c.l.b16 %v508
        %v561 = vunpack.c.h.b16 %v508
        %v562 = vunpack.c.l.b16 %v509
        %v563 = vunpack.c.h.b16 %v509
        %v564 = vunpack.c.l.b16 %v510
        %v565 = vunpack.c.h.b16 %v510
        %v566 = vunpack.c.l.b16 %v511
        %v567 = vunpack.c.h.b16 %v511
        %v568 = vunpack.c.l.b16 %v512
        %v569 = vunpack.c.h.b16 %v512
        %v570 = vunpack.c.l.b16 %v513
        %v571 = vunpack.c.h.b16 %v513
        %v572 = vunpack.c.l.b16 %v514
        %v573 = vunpack.c.h.b16 %v514
        %v574 = vunpack.c.l.b16 %v515
        %v575 = vunpack.c.h.b16 %v515
        %v576 = vpack.c.b16 %v546, %v544
        %v577 = vpack.c.b16 %v547, %v545
        %v578 = vpack.c.b16 %v550, %v548
        %v579 = vpack.c.b16 %v551, %v549
        %v580 = vpack.c.b16 %v554, %v552
        %v581 = vpack.c.b16 %v555, %v553
        %v582 = vpack.c.b16 %v558, %v556
        %v583 = vpack.c.b16 %v559, %v557
        %v584 = vpack.c.b16 %v562, %v560
        %v585 = vpack.c.b16 %v563, %v561
        %v586 = vpack.c.b16 %v566, %v564
        %v587 = vpack.c.b16 %v567, %v565
        %v588 = vpack.c.b16 %v570, %v568
        %v589 = vpack.c.b16 %v571, %v569
        %v590 = vpack.c.b16 %v574, %v572
        %v591 = vpack.c.b16 %v575, %v573
        %608 = vmatprep.subr.bf16.mxu0 %v577
        %609 = vmatpush1.bf16.msra.mxu0 %v576
        %610 = vmatprep.subr.bf16.mxu0 %v579
        %611 = vmatpush1.bf16.msra.mxu0 %v578
        %612 = vmatprep.subr.bf16.mxu0 %v581
        %613 = vmatpush1.bf16.msra.mxu0 %v580
        %614 = vmatprep.subr.bf16.mxu0 %v583
        %615 = vmatpush1.bf16.msra.mxu0 %v582
        %616 = vmatprep.subr.bf16.mxu0 %v585
        %617 = vmatpush1.bf16.msra.mxu0 %v584
        %618 = vmatprep.subr.bf16.mxu0 %v587
        %619 = vmatpush1.bf16.msra.mxu0 %v586
        %620 = vmatprep.subr.bf16.mxu0 %v589
        %621 = vmatpush1.bf16.msra.mxu0 %v588
        %622 = vmatprep.subr.bf16.mxu0 %v591
        %623 = vmatpush1.bf16.msra.mxu0 %v590
        %624 = vmatprep.subr.bf16.mxu0 0
        %625 = vmatpush1.bf16.msra.mxu0 0
        %626 = vmatprep.subr.bf16.mxu0 0
        %627 = vmatpush1.bf16.msra.mxu0 0
        %628 = vmatprep.subr.bf16.mxu0 0
        %629 = vmatpush1.bf16.msra.mxu0 0
        %630 = vmatprep.subr.bf16.mxu0 0
        %631 = vmatpush1.bf16.msra.mxu0 0
        %632 = vmatprep.subr.bf16.mxu0 0
        %633 = vmatpush1.bf16.msra.mxu0 0
        %634 = vmatprep.subr.bf16.mxu0 0
        %635 = vmatpush1.bf16.msra.mxu0 0
        %636 = vmatprep.subr.bf16.mxu0 0
        %637 = vmatpush1.bf16.msra.mxu0 0
        %638 = vmatprep.subr.bf16.mxu0 0
        %639 = vmatpush1.bf16.msra.mxu0 0
        %640 = vmatprep.mubr.bf16.mxu0 0
        %641 = vmatmul.mubr.bf16.gmra.mrb[0].mxu0 %v499
        %v642 = vpop.f32.mrb[0].mxu0
        %v643 = vadd.f32 %v521, %v642
        %v644 = vpop.f32.mrb[0].mxu0
        %v645 = vadd.f32 %v525, %v644
        %v646 = vpop.f32.mrb[0].mxu0
        %v647 = vpop.f32.mrb[0].mxu0
        %648 = vdwg.mxu0
        %v649 = vmax.f32 %v643, 0.0
        %v650 = vmax.f32 %v645, 0.0
        %v651 = vpack.c.bf16 %v649, %v649
        %v652 = vpack.c.bf16 %v650, %v650
        %v653 = vld [vmem:[#allocation7] sm:$0xf]
        %v654 = vld [vmem:[#allocation7 + $0x4] sm:$0xf]
        %v655 = vld [vmem:[#allocation7 + $0x8] sm:$0xf]
        %v656 = vld [vmem:[#allocation7 + $0xc] sm:$0xf]
        %v657 = vld [vmem:[#allocation7 + $0x10] sm:$0xf]
        %v658 = vld [vmem:[#allocation7 + $0x14] sm:$0xf]
        %v659 = vld [vmem:[#allocation7 + $0x18] sm:$0xf]
        %v660 = vld [vmem:[#allocation7 + $0x1c] sm:$0xf]
        %v661 = vld [vmem:[#allocation7 + $0x20] sm:$0xf]
        %v662 = vld [vmem:[#allocation7 + $0x24] sm:$0xf]
        %v663 = vld [vmem:[#allocation7 + $0x28] sm:$0xf]
        %v664 = vld [vmem:[#allocation7 + $0x2c] sm:$0xf]
        %v665 = vld [vmem:[#allocation7 + $0x30] sm:$0xf]
        %v666 = vld [vmem:[#allocation7 + $0x34] sm:$0xf]
        %v667 = vld [vmem:[#allocation7 + $0x38] sm:$0xf]
        %v668 = vld [vmem:[#allocation7 + $0x3c] sm:$0xf]
        %v669 = vld [vmem:[#allocation7 + $0x40] sm:$0xf]
        %v670 = vld [vmem:[#allocation7 + $0x44] sm:$0xf]
        %v671 = vld [vmem:[#allocation7 + $0x48] sm:$0xf]
        %v672 = vld [vmem:[#allocation7 + $0x4c] sm:$0xf]
        %v673 = vld [vmem:[#allocation7 + $0x50] sm:$0xf]
        %v674 = vld [vmem:[#allocation7 + $0x54] sm:$0xf]
        %v675 = vld [vmem:[#allocation7 + $0x58] sm:$0xf]
        %v676 = vld [vmem:[#allocation7 + $0x5c] sm:$0xf]
        %v677 = vld [vmem:[#allocation7 + $0x60] sm:$0xf]
        %v678 = vld [vmem:[#allocation7 + $0x64] sm:$0xf]
        %v679 = vld [vmem:[#allocation7 + $0x68] sm:$0xf]
        %v680 = vld [vmem:[#allocation7 + $0x6c] sm:$0xf]
        %v681 = vld [vmem:[#allocation7 + $0x70] sm:$0xf]
        %v682 = vld [vmem:[#allocation7 + $0x74] sm:$0xf]
        %v683 = vld [vmem:[#allocation7 + $0x78] sm:$0xf]
        %v684 = vld [vmem:[#allocation7 + $0x7c] sm:$0xf]
        %v685 = vld [vmem:[%s6] sm:$0x1]
        %v687 = vlaneseq
        %v688 = vshrl.u32 %v687, 7
        %v689 = vsub.s32 0, %v688
        %v690 = vrot.slane %v685, %v689
        %v724 = vunpack.c.l.b16 %v653
        %v725 = vunpack.c.l.b16 %v654
        %v726 = vunpack.c.l.b16 %v655
        %v727 = vunpack.c.l.b16 %v656
        %v728 = vunpack.c.l.b16 %v657
        %v729 = vunpack.c.l.b16 %v658
        %v730 = vunpack.c.l.b16 %v659
        %v731 = vunpack.c.l.b16 %v660
        %v732 = vunpack.c.l.b16 %v661
        %v733 = vunpack.c.l.b16 %v662
        %v734 = vunpack.c.l.b16 %v663
        %v735 = vunpack.c.l.b16 %v664
        %v736 = vunpack.c.l.b16 %v665
        %v737 = vunpack.c.l.b16 %v666
        %v738 = vunpack.c.l.b16 %v667
        %v739 = vunpack.c.l.b16 %v668
        %v740 = vunpack.c.l.b16 %v669
        %v741 = vunpack.c.l.b16 %v670
        %v742 = vunpack.c.l.b16 %v671
        %v743 = vunpack.c.l.b16 %v672
        %v744 = vunpack.c.l.b16 %v673
        %v745 = vunpack.c.l.b16 %v674
        %v746 = vunpack.c.l.b16 %v675
        %v747 = vunpack.c.l.b16 %v676
        %v748 = vunpack.c.l.b16 %v677
        %v749 = vunpack.c.l.b16 %v678
        %v750 = vunpack.c.l.b16 %v679
        %v751 = vunpack.c.l.b16 %v680
        %v752 = vunpack.c.l.b16 %v681
        %v753 = vunpack.c.l.b16 %v682
        %v754 = vunpack.c.l.b16 %v683
        %v755 = vunpack.c.l.b16 %v684
        %v756 = vpack.c.b16 %v725, %v724
        %v757 = vpack.c.b16 %v727, %v726
        %v758 = vpack.c.b16 %v729, %v728
        %v759 = vpack.c.b16 %v731, %v730
        %v760 = vpack.c.b16 %v733, %v732
        %v761 = vpack.c.b16 %v735, %v734
        %v762 = vpack.c.b16 %v737, %v736
        %v763 = vpack.c.b16 %v739, %v738
        %v764 = vpack.c.b16 %v741, %v740
        %v765 = vpack.c.b16 %v743, %v742
        %v766 = vpack.c.b16 %v745, %v744
        %v767 = vpack.c.b16 %v747, %v746
        %v768 = vpack.c.b16 %v749, %v748
        %v769 = vpack.c.b16 %v751, %v750
        %v770 = vpack.c.b16 %v753, %v752
        %v771 = vpack.c.b16 %v755, %v754
        %788 = vmatprep.subr.bf16.mxu0 0
        %789 = vmatpush1.bf16.msra.mxu0 %v756
        %790 = vmatprep.subr.bf16.mxu0 0
        %791 = vmatpush1.bf16.msra.mxu0 %v757
        %792 = vmatprep.subr.bf16.mxu0 0
        %793 = vmatpush1.bf16.msra.mxu0 %v758
        %794 = vmatprep.subr.bf16.mxu0 0
        %795 = vmatpush1.bf16.msra.mxu0 %v759
        %796 = vmatprep.subr.bf16.mxu0 0
        %797 = vmatpush1.bf16.msra.mxu0 %v760
        %798 = vmatprep.subr.bf16.mxu0 0
        %799 = vmatpush1.bf16.msra.mxu0 %v761
        %800 = vmatprep.subr.bf16.mxu0 0
        %801 = vmatpush1.bf16.msra.mxu0 %v762
        %802 = vmatprep.subr.bf16.mxu0 0
        %803 = vmatpush1.bf16.msra.mxu0 %v763
        %804 = vmatprep.subr.bf16.mxu0 0
        %805 = vmatpush1.bf16.msra.mxu0 %v764
        %806 = vmatprep.subr.bf16.mxu0 0
        %807 = vmatpush1.bf16.msra.mxu0 %v765
        %808 = vmatprep.subr.bf16.mxu0 0
        %809 = vmatpush1.bf16.msra.mxu0 %v766
        %810 = vmatprep.subr.bf16.mxu0 0
        %811 = vmatpush1.bf16.msra.mxu0 %v767
        %812 = vmatprep.subr.bf16.mxu0 0
        %813 = vmatpush1.bf16.msra.mxu0 %v768
        %814 = vmatprep.subr.bf16.mxu0 0
        %815 = vmatpush1.bf16.msra.mxu0 %v769
        %816 = vmatprep.subr.bf16.mxu0 0
        %817 = vmatpush1.bf16.msra.mxu0 %v770
        %818 = vmatprep.subr.bf16.mxu0 0
        %819 = vmatpush1.bf16.msra.mxu0 %v771
        %820 = vmatprep.mubr.bf16.mxu0 %v652
        %821 = vmatmul.mubr.bf16.gmra.mrb[0].mxu0 %v651
        %v822 = vpop.f32.mrb[0].mxu0
        %v823 = vadd.f32 %v690, %v822
        %v824 = vpop.f32.mrb[0].mxu0
        %v825 = vpop.f32.mrb[0].mxu0
        %v826 = vpop.f32.mrb[0].mxu0
        %827 = vdwg.mxu0
        %v828 = vmax.f32 %v823, 0.0
        %v829 = vpack.c.bf16 %v828, %v828
        %v830 = vld [vmem:[#allocation9] sm:$0xf]
        %v831 = vld [vmem:[#allocation9 + $0x4] sm:$0xf]
        %v832 = vld [vmem:[#allocation9 + $0x8] sm:$0xf]
        %v833 = vld [vmem:[#allocation9 + $0xc] sm:$0xf]
        %v834 = vld [vmem:[#allocation9 + $0x10] sm:$0xf]
        %v835 = vld [vmem:[#allocation9 + $0x14] sm:$0xf]
        %v836 = vld [vmem:[#allocation9 + $0x18] sm:$0xf]
        %v837 = vld [vmem:[#allocation9 + $0x1c] sm:$0xf]
        %v838 = vld [vmem:[#allocation9 + $0x20] sm:$0xf]
        %v839 = vld [vmem:[#allocation9 + $0x24] sm:$0xf]
        %v840 = vld [vmem:[#allocation9 + $0x28] sm:$0xf]
        %v841 = vld [vmem:[#allocation9 + $0x2c] sm:$0xf]
        %v842 = vld [vmem:[#allocation9 + $0x30] sm:$0xf]
        %v843 = vld [vmem:[#allocation9 + $0x34] sm:$0xf]
        %v844 = vld [vmem:[#allocation9 + $0x38] sm:$0xf]
        %v845 = vld [vmem:[#allocation9 + $0x3c] sm:$0xf]
        %v862 = vunpack.c.l.b16 %v830
        %v863 = vunpack.c.l.b16 %v831
        %v864 = vunpack.c.l.b16 %v832
        %v865 = vunpack.c.l.b16 %v833
        %v866 = vunpack.c.l.b16 %v834
        %v867 = vunpack.c.l.b16 %v835
        %v868 = vunpack.c.l.b16 %v836
        %v869 = vunpack.c.l.b16 %v837
        %v870 = vunpack.c.l.b16 %v838
        %v871 = vunpack.c.l.b16 %v839
        %v872 = vunpack.c.l.b16 %v840
        %v873 = vunpack.c.l.b16 %v841
        %v874 = vunpack.c.l.b16 %v842
        %v875 = vunpack.c.l.b16 %v843
        %v876 = vunpack.c.l.b16 %v844
        %v877 = vunpack.c.l.b16 %v845
        %v878 = vpack.c.b16 %v863, %v862
        %v879 = vpack.c.b16 %v865, %v864
        %v880 = vpack.c.b16 %v867, %v866
        %v881 = vpack.c.b16 %v869, %v868
        %v882 = vpack.c.b16 %v871, %v870
        %v883 = vpack.c.b16 %v873, %v872
        %v884 = vpack.c.b16 %v875, %v874
        %v885 = vpack.c.b16 %v877, %v876
        %894 = vmatprep.subr.bf16.mxu0 0
        %895 = vmatpush1.bf16.msra.mxu0 %v878
        %896 = vmatprep.subr.bf16.mxu0 0
        %897 = vmatpush1.bf16.msra.mxu0 %v879
        %898 = vmatprep.subr.bf16.mxu0 0
        %899 = vmatpush1.bf16.msra.mxu0 %v880
        %900 = vmatprep.subr.bf16.mxu0 0
        %901 = vmatpush1.bf16.msra.mxu0 %v881
        %902 = vmatprep.subr.bf16.mxu0 0
        %903 = vmatpush1.bf16.msra.mxu0 %v882
        %904 = vmatprep.subr.bf16.mxu0 0
        %905 = vmatpush1.bf16.msra.mxu0 %v883
        %906 = vmatprep.subr.bf16.mxu0 0
        %907 = vmatpush1.bf16.msra.mxu0 %v884
        %908 = vmatprep.subr.bf16.mxu0 0
        %909 = vmatpush1.bf16.msra.mxu0 %v885
        %910 = vmatprep.subr.bf16.mxu0 0
        %911 = vmatpush1.bf16.msra.mxu0 0
        %912 = vmatprep.subr.bf16.mxu0 0
        %913 = vmatpush1.bf16.msra.mxu0 0
        %914 = vmatprep.subr.bf16.mxu0 0
        %915 = vmatpush1.bf16.msra.mxu0 0
        %916 = vmatprep.subr.bf16.mxu0 0
        %917 = vmatpush1.bf16.msra.mxu0 0
        %918 = vmatprep.subr.bf16.mxu0 0
        %919 = vmatpush1.bf16.msra.mxu0 0
        %920 = vmatprep.subr.bf16.mxu0 0
        %921 = vmatpush1.bf16.msra.mxu0 0
        %922 = vmatprep.subr.bf16.mxu0 0
        %923 = vmatpush1.bf16.msra.mxu0 0
        %924 = vmatprep.subr.bf16.mxu0 0
        %925 = vmatpush1.bf16.msra.mxu0 0
        %926 = vmatprep.mubr.bf16.mxu0 0
        %927 = vmatmul.mubr.bf16.gmra.mrb[0].mxu0 %v829
        %v928 = vpop.f32.mrb[0].mxu0
        %v929 = vadd.f32 0.0, %v928
        %v930 = vpop.f32.mrb[0].mxu0
        %v931 = vpop.f32.mrb[0].mxu0
        %v932 = vpop.f32.mrb[0].mxu0
        %933 = vdwg.mxu0
        %v934 = vld [vmem:[%s8] sm:$0x1]
        %v936 = vlaneseq
        %v937 = vshrl.u32 %v936, 7
        %v938 = vsub.s32 0, %v937
        %v939 = vrot.slane %v934, %v938
        %v941 = vadd.f32 %v929, %v939
        %vm942 = vcmask 80896
        %943 = vst.msk [vmem:[%s405] sm:$0xff] %vm942, %v941
        %p944 = scmp.lt.s32.totalorder %s25, 2
        %s945 = scalar_select %p944, %s25, 2
        %s946 = smul.addr %s945, 8
        %s947 = scalar_lea.vmem %s9, %s946
        // Predicated region
        $region77: #{tpu_custom_call.1} parent=55 // pred_check
          %p948 = pneg %p237
        $region78: #{tpu_custom_call.1} parent=55 // pred_check_branch
          %950 = sbr.rel (%p948) target = $region80
        $region79: #{tpu_custom_call.1} parent=55 // pred_region
          _
        $region80: #{tpu_custom_call.1} parent=55 // pred_fallthru
          _
      $region56: #{tpu_custom_call.1} parent=5 // pred_fallthru
        _
      %p951 = scmp.le.s32.totalorder 2, %s20
      // Predicated region
      $region81: #{tpu_custom_call.1} parent=5 // pred_check
        %p952 = pneg %p951
      $region82: #{tpu_custom_call.1} parent=5 // pred_check_branch
        %954 = sbr.rel (%p952) target = $region84
      $region83: #{tpu_custom_call.1} parent=5 // pred_region
        %s955 = ssub.s32 %s20, 2
        // Predicated region
        $region85: #{tpu_custom_call.1} parent=83 // pred_check
          %p956 = pneg %p243
        $region86: #{tpu_custom_call.1} parent=83 // pred_check_branch
          %958 = sbr.rel (%p956) target = $region88
        $region87: #{tpu_custom_call.1} parent=83 // pred_region
          %p959 = scmp.lt.s32.totalorder %s26, 2
          %s960 = scalar_select %p959, %s26, 2
          %s961 = smul.addr %s960, 8
          %s962 = scalar_lea.vmem %s9, %s961
        $region88: #{tpu_custom_call.1} parent=83 // pred_fallthru
          _
      $region84: #{tpu_custom_call.1} parent=5 // pred_fallthru
        _
    $region6: #{tpu_custom_call.1} parent=1 // loop_footer
      %s24 = sadd.s32 1, %s20
    $region7: #{tpu_custom_call.1} parent=1 // loop_footer_branch
      %19 = sbr.rel target = $region3
    $region8: #{tpu_custom_call.1} parent=1 // loop_exit
      _
    %963 = vsyncpa [#allocation3], 1
    %s964 = scalar_lea.sflag [#allocation3], 1
    %965 = vsyncpa %s964, 1
    %966 = vsyncpa [#allocation5], 1
    %967 = vsyncpa [#allocation8], 1

</llo_original>
